<compile_context>
chip_gen: v7x
topology: tpu7x:2x2x1
jax: 0.10.0
libtpu: 0.0.40
codegen_flags: <defaults>
</compile_context>

<pallas_src>
import functools
import math

import jax
import jax.numpy as jnp
from jax.experimental import pallas as pl
from jax.experimental.pallas import tpu as pltpu


# ---------------------------------------------------------------------------
# Frequency construction (plain JAX glue - mirrors __init__ + get_freqs).
# ---------------------------------------------------------------------------
def make_rope2d_freqs(dim, h, w, seq_len_patches, head_dim, theta=10000.0):
    """Returns (freqs_cos, freqs_sin) with shape (seq_len_patches, head_dim)."""
    max_freqs = max(64, dim)
    freqs = 1.0 / theta ** (jnp.arange(0, max_freqs, 2, dtype=jnp.float32) / max_freqs)

    y_pos = jnp.arange(h, dtype=jnp.float32)
    x_pos = jnp.arange(w, dtype=jnp.float32)
    grid_y, grid_x = jnp.meshgrid(y_pos, x_pos, indexing="ij")
    grid_y = grid_y.reshape(-1)
    grid_x = grid_x.reshape(-1)

    half_head_dim = head_dim // 2
    freqs_per_dim = freqs[: half_head_dim // 2]
    freqs_y = jnp.outer(grid_y[:seq_len_patches], freqs_per_dim)
    freqs_x = jnp.outer(grid_x[:seq_len_patches], freqs_per_dim)
    f = jnp.concatenate([freqs_y, freqs_x], axis=-1)

    if f.shape[-1] < head_dim:
        pad = jnp.zeros((seq_len_patches, head_dim - f.shape[-1]), dtype=jnp.float32)
        f = jnp.concatenate([f, pad], axis=-1)
    elif f.shape[-1] > head_dim:
        f = f[:, :head_dim]

    return jnp.cos(f), jnp.sin(f)


# ---------------------------------------------------------------------------
# VMEM / block-size budgeting.
# ---------------------------------------------------------------------------
def _vmem_limit_bytes():
    try:
        cap = int(pltpu.get_tpu_info().vmem_capacity_bytes)
    except Exception:
        cap = 64 * 1024 * 1024
    # Clamp to per-TensorCore VMEM (64 MiB on v7x-class parts, even if the query
    # reports per-chip capacity) and leave headroom for Mosaic's own scratch.
    return (min(cap, 64 * 1024 * 1024) * 3) // 4


def _choose_leading_block(rows, bytes_per_row, sublane_align):
    """Rows per grid step: ~2 MiB per stream, >= 4 pipeline steps when possible.

    Per-grid-step overhead is only ~0.35 us and the HBM roofline saturates with
    few-MiB tiles, so there is no reason to fill VMEM with huge blocks (that only
    risks spills on v7x's 64 MiB/TC).  bytes_per_row is budgeted in f32-equivalent
    bytes, which also covers bf16 (16,128) tiling and the in-kernel f32 upcast
    temporaries.  No divisor-of-rows requirement: the grid uses pl.cdiv and the
    padded tail block is safe for this purely elementwise op.
    """
    target_bytes = 2 * 1024 * 1024
    tr = max(1, target_bytes // max(1, bytes_per_row))
    if rows >= 4 * sublane_align:
        tr = min(tr, rows // 4)          # keep >= 4 grid steps (v7x: 2 TCs pipelined)
    tr = max(1, min(tr, rows))
    if tr == rows:
        return rows                      # block dim == full array dim: always legal
    tr = (tr // sublane_align) * sublane_align
    return tr if tr > 0 else min(sublane_align, rows)


# ---------------------------------------------------------------------------
# Pallas kernel: out = x*cos + x[i+half]*sinp + x[i-half]*sinm, elementwise.
#
# sinp is nonzero only at lanes with (i mod D) <  D/2 (carrying the -x2 sign) and
# sinm only at lanes with (i mod D) >= D/2, so the rotate_half pairing, its sign
# and the CLS pass-through are all folded into the precomputed tables.  The two
# static lane shifts never contribute at the positions where they wrap across a
# token / head / block boundary (the corresponding table entry is zero there).
# ---------------------------------------------------------------------------
def rope_kernel(q_ref, k_ref, cos_ref, sinp_ref, sinm_ref, qo_ref, ko_ref, *,
                half, use_roll):
    cos = cos_ref[...]       # (1, L) or (1, S, D), f32, broadcasts over the block rows
    sinp = sinp_ref[...]
    sinm = sinm_ref[...]
    n = q_ref.shape[-1]

    def shift(x, s):
        # y[i] = x[(i - s) mod n]  (jnp.roll convention); s normalized to [0, n).
        s = s % n
        if s == 0:
            return x
        if use_roll:
            # Lane axis is a multiple of 128: XLU rotate, co-issues with VPU FMAs.
            return pltpu.roll(x, shift=s, axis=x.ndim - 1)
        # Narrow lane axis (< one 128-lane tile): in-tile slice + concat.
        return jnp.concatenate([x[..., n - s:], x[..., :n - s]], axis=-1)

    def rope_one(x_ref, o_ref):
        x = x_ref[...].astype(jnp.float32)
        x_plus = shift(x, -half)     # x[i + half] at lanes where sinp != 0
        x_minus = shift(x, half)     # x[i - half] at lanes where sinm != 0
        o_ref[...] = (x * cos + x_plus * sinp + x_minus * sinm).astype(o_ref.dtype)

    rope_one(q_ref, qo_ref)   # q then k sequentially keeps f32 temporaries small
    rope_one(k_ref, ko_ref)


# ---------------------------------------------------------------------------
# Wrapper: Pallas equivalent of RoPE2DPositionalEncoding.apply_rope_to_attention.
# ---------------------------------------------------------------------------
def apply_rope_to_attention(q, k, v, *, dim, h, w, theta=10000.0):
    B, H, S, D = q.shape
    BH = B * H
    half = D // 2

    # --- tables (tiny, plain JAX) -------------------------------------------
    cos_p, sin_p = make_rope2d_freqs(dim, h, w, S - 1, D, theta)
    # Row 0 = CLS token: cos=1 / sin=0 -> passes through unchanged, so a single
    # uniform elementwise pass reproduces torch.cat([cls, rope(patches)], dim=2).
    cos_t = jnp.concatenate([jnp.ones((1, D), jnp.float32), cos_p], axis=0)    # (S, D)
    sin_t = jnp.concatenate([jnp.zeros((1, D), jnp.float32), sin_p], axis=0)   # (S, D)
    first = (jnp.arange(D) < half)[None, :]
    sinp_t = jnp.where(first, -sin_t, 0.0)    # multiplies x[i + half]
    sinm_t = jnp.where(first, 0.0, sin_t)     # multiplies x[i - half]

    vmem_limit = _vmem_limit_bytes()

    # --- layout: lane-dense flattened (rows, g*S*D) whenever reachable -------
    # Fold (S, D) (and g consecutive heads, when that makes the lane width a
    # multiple of 128) into a single lane axis so stores are unmasked 128-wide
    # vst's instead of 25%-utilized vst.msk at D=32.  The reshape is free in HBM.
    g = 128 // math.gcd(S * D, 128)
    if BH % g == 0:
        rows, lane = BH // g, g * S * D
        qf = q.reshape(rows, lane)
        kf = k.reshape(rows, lane)
        cos_b = jnp.tile(cos_t.reshape(-1), g).reshape(1, lane)
        sinp_b = jnp.tile(sinp_t.reshape(-1), g).reshape(1, lane)
        sinm_b = jnp.tile(sinm_t.reshape(-1), g).reshape(1, lane)
        tr = _choose_leading_block(rows, lane * 4, sublane_align=8)
        grid = (pl.cdiv(rows, tr),)
        data_spec = pl.BlockSpec((tr, lane), lambda i: (i, 0))
        tab_spec = pl.BlockSpec((1, lane), lambda i: (0, 0))
        out_shapes = (jax.ShapeDtypeStruct((rows, lane), q.dtype),
                      jax.ShapeDtypeStruct((rows, lane), k.dtype))
        use_roll = (lane % 128 == 0)
    else:
        # Fallback (B*H not divisible by the grouping factor, e.g. odd head
        # counts with D < 128): proven per-(batch*head) 3-D layout.
        rows = BH
        qf = q.reshape(rows, S, D)
        kf = k.reshape(rows, S, D)
        cos_b = cos_t.reshape(1, S, D)
        sinp_b = sinp_t.reshape(1, S, D)
        sinm_b = sinm_t.reshape(1, S, D)
        row_bytes = (-(-S // 8) * 8) * (-(-D // 128) * 128) * 4   # f32-equiv, padded
        tr = _choose_leading_block(rows, row_bytes, sublane_align=1)
        grid = (pl.cdiv(rows, tr),)
        data_spec = pl.BlockSpec((tr, S, D), lambda i: (i, 0, 0))
        tab_spec = pl.BlockSpec((1, S, D), lambda i: (0, 0, 0))
        out_shapes = (jax.ShapeDtypeStruct((rows, S, D), q.dtype),
                      jax.ShapeDtypeStruct((rows, S, D), k.dtype))
        use_roll = False   # D-wide lane axis: in-tile slice+concat path

    kernel = functools.partial(rope_kernel, half=half, use_roll=use_roll)

    q_out, k_out = pl.pallas_call(
        kernel,
        out_shape=out_shapes,
        grid_spec=pltpu.PrefetchScalarGridSpec(
            num_scalar_prefetch=0,
            grid=grid,
            in_specs=[data_spec, data_spec, tab_spec, tab_spec, tab_spec],
            out_specs=[data_spec, data_spec],
        ),
        # q/k are fully overwritten by same-shaped outputs: alias them so no extra
        # HBM output allocation / copy is needed when the caller donates q and k.
        input_output_aliases={0: 0, 1: 1},
        compiler_params=pltpu.CompilerParams(
            dimension_semantics=("parallel",),
            vmem_limit_bytes=vmem_limit,
        ),
    )(qf, kf, cos_b, sinp_b, sinm_b)

    return (q_out.reshape(B, H, S, D), k_out.reshape(B, H, S, D), v)


# ---------------------------------------------------------------------------
# Pure-JAX reference (mirrors the PyTorch code) for the correctness check.
# ---------------------------------------------------------------------------
def _reference(q, k, v, *, dim, h, w, theta=10000.0):
    B, H, S, D = q.shape
    cos_p, sin_p = make_rope2d_freqs(dim, h, w, S - 1, D, theta)
    cos_p = cos_p[None, None]  # (1,1,S-1,D)
    sin_p = sin_p[None, None]

    def rotate_half(x):
        x1, x2 = jnp.split(x, 2, axis=-1)
        return jnp.concatenate([-x2, x1], axis=-1)

    q_cls, q_pat = q[:, :, :1, :], q[:, :, 1:, :]
    k_cls, k_pat = k[:, :, :1, :], k[:, :, 1:, :]
    q_pat_r = q_pat * cos_p + rotate_half(q_pat) * sin_p
    k_pat_r = k_pat * cos_p + rotate_half(k_pat) * sin_p
    q_r = jnp.concatenate([q_cls, q_pat_r], axis=2)
    k_r = jnp.concatenate([k_cls, k_pat_r], axis=2)
    return q_r, k_r, v


if __name__ == "__main__":
    # Small shapes: 4x4 patch grid -> 16 patches + 1 CLS = 17 tokens.
    B, H, D = 2, 4, 32
    h_grid, w_grid = 4, 4
    S = h_grid * w_grid + 1
    dim = H * D  # module's `dim` (embedding dim); only affects max_freqs scaling

    key = jax.random.PRNGKey(0)
    kq, kk, kv = jax.random.split(key, 3)
    q = jax.random.normal(kq, (B, H, S, D), dtype=jnp.float32)
    k = jax.random.normal(kk, (B, H, S, D), dtype=jnp.float32)
    v = jax.random.normal(kv, (B, H, S, D), dtype=jnp.float32)

    # Reference computed first so input/output aliasing in the kernel can never
    # interfere with the check inputs.
    q_ref, k_ref, v_ref = _reference(q, k, v, dim=dim, h=h_grid, w=w_grid)

    q_rope, k_rope, v_out = apply_rope_to_attention(
        q, k, v, dim=dim, h=h_grid, w=w_grid
    )
    jax.block_until_ready((q_rope, k_rope, v_out))

    assert q_rope.shape == q.shape and k_rope.shape == k.shape
    assert jnp.allclose(q_rope, q_ref, atol=1e-5, rtol=1e-5)
    assert jnp.allclose(k_rope, k_ref, atol=1e-5, rtol=1e-5)
    assert jnp.allclose(v_out, v_ref)

    print("KERNEL_OK")
</pallas_src>

<mosaic_0001>
module attributes {stable_mosaic.version = 11 : i64} {
  func.func @rope_kernel(%arg0: i32, %arg1: memref<2x2176xf32, #tpu.memory_space<vmem>>, %arg2: memref<2x2176xf32, #tpu.memory_space<vmem>>, %arg3: memref<1x2176xf32, #tpu.memory_space<vmem>>, %arg4: memref<1x2176xf32, #tpu.memory_space<vmem>>, %arg5: memref<1x2176xf32, #tpu.memory_space<vmem>>, %arg6: memref<2x2176xf32, #tpu.memory_space<vmem>>, %arg7: memref<2x2176xf32, #tpu.memory_space<vmem>>) attributes {dimension_semantics = [#tpu.dimension_semantics<parallel>], iteration_bounds = array<i64: 1>, scalar_prefetch = 0 : i64, scratch_operands = 0 : i64, tpu.core_type = #tpu.core_type<tc>, window_params = [{transform_indices = @transform_0, window_bounds = array<i64: 2, 2176>}, {transform_indices = @transform_1, window_bounds = array<i64: 2, 2176>}, {pipeline_mode = #tpu.pipeline_mode<synchronous>, transform_indices = @transform_2, window_bounds = array<i64: 1, 2176>}, {pipeline_mode = #tpu.pipeline_mode<synchronous>, transform_indices = @transform_3, window_bounds = array<i64: 1, 2176>}, {pipeline_mode = #tpu.pipeline_mode<synchronous>, transform_indices = @transform_4, window_bounds = array<i64: 1, 2176>}, {transform_indices = @transform_5, window_bounds = array<i64: 2, 2176>}, {transform_indices = @transform_6, window_bounds = array<i64: 2, 2176>}]} {
    %c0 = arith.constant 0 : index
    %c0_0 = arith.constant 0 : index
    %0 = vector.load %arg3[%c0, %c0_0] : memref<1x2176xf32, #tpu.memory_space<vmem>>, vector<1x2176xf32>
    %c0_1 = arith.constant 0 : index
    %c0_2 = arith.constant 0 : index
    %1 = vector.load %arg4[%c0_1, %c0_2] : memref<1x2176xf32, #tpu.memory_space<vmem>>, vector<1x2176xf32>
    %c0_3 = arith.constant 0 : index
    %c0_4 = arith.constant 0 : index
    %2 = vector.load %arg5[%c0_3, %c0_4] : memref<1x2176xf32, #tpu.memory_space<vmem>>, vector<1x2176xf32>
    %c0_5 = arith.constant 0 : index
    %c0_6 = arith.constant 0 : index
    %3 = vector.load %arg1[%c0_5, %c0_6] : memref<2x2176xf32, #tpu.memory_space<vmem>>, vector<2x2176xf32>
    %c2160_i32 = arith.constant 2160 : i32
    %4 = tpu.dynamic_rotate %3 by %c2160_i32 dim 1 : vector<2x2176xf32>, i32 -> vector<2x2176xf32>
    %c16_i32 = arith.constant 16 : i32
    %5 = tpu.dynamic_rotate %3 by %c16_i32 dim 1 : vector<2x2176xf32>, i32 -> vector<2x2176xf32>
    %6 = vector.broadcast %0 : vector<1x2176xf32> to vector<2x2176xf32>
    %7 = arith.mulf %3, %6 : vector<2x2176xf32>
    %8 = vector.broadcast %1 : vector<1x2176xf32> to vector<2x2176xf32>
    %9 = arith.mulf %4, %8 : vector<2x2176xf32>
    %10 = arith.addf %7, %9 : vector<2x2176xf32>
    %11 = vector.broadcast %2 : vector<1x2176xf32> to vector<2x2176xf32>
    %12 = arith.mulf %5, %11 : vector<2x2176xf32>
    %13 = arith.addf %10, %12 : vector<2x2176xf32>
    %c0_7 = arith.constant 0 : index
    %c0_8 = arith.constant 0 : index
    %14 = vector.load %arg6[%c0_7, %c0_8] : memref<2x2176xf32, #tpu.memory_space<vmem>>, vector<2x2176xf32>
    tpu.vector_store %arg6[%c0_7, %c0_8], %13 {strides = array<i32>} : memref<2x2176xf32, #tpu.memory_space<vmem>>, vector<2x2176xf32>,
    %c0_9 = arith.constant 0 : index
    %c0_10 = arith.constant 0 : index
    %15 = vector.load %arg2[%c0_9, %c0_10] : memref<2x2176xf32, #tpu.memory_space<vmem>>, vector<2x2176xf32>
    %c2160_i32_11 = arith.constant 2160 : i32
    %16 = tpu.dynamic_rotate %15 by %c2160_i32_11 dim 1 : vector<2x2176xf32>, i32 -> vector<2x2176xf32>
    %c16_i32_12 = arith.constant 16 : i32
    %17 = tpu.dynamic_rotate %15 by %c16_i32_12 dim 1 : vector<2x2176xf32>, i32 -> vector<2x2176xf32>
    %18 = vector.broadcast %0 : vector<1x2176xf32> to vector<2x2176xf32>
    %19 = arith.mulf %15, %18 : vector<2x2176xf32>
    %20 = vector.broadcast %1 : vector<1x2176xf32> to vector<2x2176xf32>
    %21 = arith.mulf %16, %20 : vector<2x2176xf32>
    %22 = arith.addf %19, %21 : vector<2x2176xf32>
    %23 = vector.broadcast %2 : vector<1x2176xf32> to vector<2x2176xf32>
    %24 = arith.mulf %17, %23 : vector<2x2176xf32>
    %25 = arith.addf %22, %24 : vector<2x2176xf32>
    %c0_13 = arith.constant 0 : index
    %c0_14 = arith.constant 0 : index
    %26 = vector.load %arg7[%c0_13, %c0_14] : memref<2x2176xf32, #tpu.memory_space<vmem>>, vector<2x2176xf32>
    tpu.vector_store %arg7[%c0_13, %c0_14], %25 {strides = array<i32>} : memref<2x2176xf32, #tpu.memory_space<vmem>>, vector<2x2176xf32>,
    return
  }
  func.func @transform_0(%arg0: i32) -> (i32, i32) {
    %c0_i32 = arith.constant 0 : i32
    %c0_i32_0 = arith.constant 0 : i32
    return %arg0, %c0_i32 : i32, i32
  }
  func.func @transform_1(%arg0: i32) -> (i32, i32) {
    %c0_i32 = arith.constant 0 : i32
    %c0_i32_0 = arith.constant 0 : i32
    return %arg0, %c0_i32 : i32, i32
  }
  func.func @transform_2(%arg0: i32) -> (i32, i32) {
    %c0_i32 = arith.constant 0 : i32
    %c0_i32_0 = arith.constant 0 : i32
    %c0_i32_1 = arith.constant 0 : i32
    return %c0_i32, %c0_i32_0 : i32, i32
  }
  func.func @transform_3(%arg0: i32) -> (i32, i32) {
    %c0_i32 = arith.constant 0 : i32
    %c0_i32_0 = arith.constant 0 : i32
    %c0_i32_1 = arith.constant 0 : i32
    return %c0_i32, %c0_i32_0 : i32, i32
  }
  func.func @transform_4(%arg0: i32) -> (i32, i32) {
    %c0_i32 = arith.constant 0 : i32
    %c0_i32_0 = arith.constant 0 : i32
    %c0_i32_1 = arith.constant 0 : i32
    return %c0_i32, %c0_i32_0 : i32, i32
  }
  func.func @transform_5(%arg0: i32) -> (i32, i32) {
    %c0_i32 = arith.constant 0 : i32
    %c0_i32_0 = arith.constant 0 : i32
    return %arg0, %c0_i32 : i32, i32
  }
  func.func @transform_6(%arg0: i32) -> (i32, i32) {
    %c0_i32 = arith.constant 0 : i32
    %c0_i32_0 = arith.constant 0 : i32
    return %arg0, %c0_i32 : i32, i32
  }
}

</mosaic_0001>

<llo_original>
// kernel: tpu_custom_call.1
$region0: #{tpu_custom_call.1}
  #allocation0 [shape = 'u32[]', space=smem, size = 0x4, offset = 0x4, fixed_abs, tag = 'smem constant byte address 0x4 - core index']
  #allocation1 [shape = 'u32[144,128]{1,0:T(1,128)}', space=vmem, size = 0x12000, scoped, tag = 'internal scratch']
  %s0 = inlined_call_operand.hbm [shape: f32[2,2176], index: 0, kind: input, shape index: {}, may-alias: {0,5}]
  %s1 = inlined_call_operand.hbm [shape: f32[2,2176], index: 1, kind: input, shape index: {}, may-alias: {1,6}]
  %s2 = inlined_call_operand.vmem [shape: f32[1,2176], index: 2, kind: input, shape index: {}]
  %s3 = inlined_call_operand.vmem [shape: f32[1,2176], index: 3, kind: input, shape index: {}]
  %s4 = inlined_call_operand.vmem [shape: f32[1,2176], index: 4, kind: input, shape index: {}]
  %s5 = inlined_call_operand.hbm [shape: f32[2,2176], index: 5, kind: output, shape index: {0}, may-alias: {0,5}]
  %s6 = inlined_call_operand.hbm [shape: f32[2,2176], index: 6, kind: output, shape index: {1}, may-alias: {1,6}]
  %7 = xla_tuple %s5, %s6
  %s8 = sld [smem:[#allocation0]]
  $region46: #{tpu_custom_call.1} parent=0
    _
  %s10 = ssub.s32 1, %s8
  %s11 = scalar_select 0, %s10, %s8
  $region1: #{tpu_custom_call.1} parent=0
    #allocation2 [shape = 'u8[17408]{0}', space=vmem, size = 0x4400, scoped, tag = 'input window, operand 0, single buffered']
    #allocation3 [shape = 's32[1]{0}', space=sflag, size = 0x4, scoped, tag = 'scoped memory for tpu_custom_call.1']
    #allocation4 [shape = 's32[1]{0}', space=sflag, size = 0x4, scoped, tag = 'scoped memory for tpu_custom_call.1']
    #allocation5 [shape = 'u8[17408]{0}', space=vmem, size = 0x4400, scoped, tag = 'input window, operand 1, single buffered']
    #allocation6 [shape = 's32[1]{0}', space=sflag, size = 0x4, scoped, tag = 'scoped memory for tpu_custom_call.1']
    #allocation7 [shape = 'u8[17408]{0}', space=vmem, size = 0x4400, scoped, tag = 'output window, operand 0, single buffered']
    #allocation8 [shape = 'u8[17408]{0}', space=vmem, size = 0x4400, scoped, tag = 'output window, operand 1, single buffered']
    #allocation9 [shape = 's32[1]{0}', space=sflag, size = 0x4, scoped, tag = 'scoped memory for tpu_custom_call.1']
    %12 = vsyncpa [#allocation3], 0
    %13 = vsyncpa [#allocation6], 0
    %14 = vsyncpa [#allocation4], 0
    %15 = vsyncpa [#allocation9], 0
    // Predicated region
    $region2: #{tpu_custom_call.1} parent=1 // pred_check
      _
    $region3: #{tpu_custom_call.1} parent=1 // pred_check_branch
      %17 = sbr.rel (0) target = $region5
    $region4: #{tpu_custom_call.1} parent=1 // pred_region
      %s19 = ssub.s32 544, 544
      %20 = vsyncadd [#allocation3], %s19
      %s22 = sshll.u32 [#allocation2], 4
      %s23 = int_to_ptr.vmem [resolvable:$true] %s22
      %25 = dma.hbm_to_vmem [thread:$0]  %s0, 544, %s23, [#allocation3]
    $region5: #{tpu_custom_call.1} parent=1 // pred_fallthru
      _
    // Predicated region
    $region6: #{tpu_custom_call.1} parent=1 // pred_check
      _
    $region7: #{tpu_custom_call.1} parent=1 // pred_check_branch
      %27 = sbr.rel (0) target = $region9
    $region8: #{tpu_custom_call.1} parent=1 // pred_region
      %s29 = ssub.s32 544, 544
      %30 = vsyncadd [#allocation6], %s29
      %s32 = sshll.u32 [#allocation5], 4
      %s33 = int_to_ptr.vmem [resolvable:$true] %s32
      %35 = dma.hbm_to_vmem [thread:$0]  %s1, 544, %s33, [#allocation6]
    $region9: #{tpu_custom_call.1} parent=1 // pred_fallthru
      _
    // Predicated region
    $region10: #{tpu_custom_call.1} parent=1 // pred_check
      _
    $region11: #{tpu_custom_call.1} parent=1 // pred_check_branch
      %37 = sbr.rel (0) target = $region13
    $region12: #{tpu_custom_call.1} parent=1 // pred_region
      _
    $region13: #{tpu_custom_call.1} parent=1 // pred_fallthru
      _
    // Predicated region
    $region14: #{tpu_custom_call.1} parent=1 // pred_check
      _
    $region15: #{tpu_custom_call.1} parent=1 // pred_check_branch
      %39 = sbr.rel (0) target = $region17
    $region16: #{tpu_custom_call.1} parent=1 // pred_region
      _
    $region17: #{tpu_custom_call.1} parent=1 // pred_fallthru
      _
    // Predicated region
    $region18: #{tpu_custom_call.1} parent=1 // pred_check
      _
    $region19: #{tpu_custom_call.1} parent=1 // pred_check_branch
      %41 = sbr.rel (0) target = $region21
    $region20: #{tpu_custom_call.1} parent=1 // pred_region
      _
    $region21: #{tpu_custom_call.1} parent=1 // pred_fallthru
      _
    // Predicated region
    $region22: #{tpu_custom_call.1} parent=1 // pred_check
      _
    $region23: #{tpu_custom_call.1} parent=1 // pred_check_branch
      %43 = sbr.rel (0) target = $region25
    $region24: #{tpu_custom_call.1} parent=1 // pred_region
      %44 = dma.done [#allocation3], 544
    $region25: #{tpu_custom_call.1} parent=1 // pred_fallthru
      _
    // Predicated region
    $region26: #{tpu_custom_call.1} parent=1 // pred_check
      _
    $region27: #{tpu_custom_call.1} parent=1 // pred_check_branch
      %46 = sbr.rel (0) target = $region29
    $region28: #{tpu_custom_call.1} parent=1 // pred_region
      %47 = dma.done [#allocation6], 544
    $region29: #{tpu_custom_call.1} parent=1 // pred_fallthru
      _
    %v48 = vld [vmem:[%s2] sm:$0xff]
    %v49 = vld [vmem:[%s2 + $0x8] sm:$0xff]
    %v50 = vld [vmem:[%s2 + $0x10] sm:$0x1]
    %v51 = vld [vmem:[%s3] sm:$0xff]
    %v52 = vld [vmem:[%s3 + $0x8] sm:$0xff]
    %v53 = vld [vmem:[%s3 + $0x10] sm:$0x1]
    %v54 = vld [vmem:[%s4] sm:$0xff]
    %v55 = vld [vmem:[%s4 + $0x8] sm:$0xff]
    %v56 = vld [vmem:[%s4 + $0x10] sm:$0x1]
    %v57 = vld [vmem:[#allocation2] sm:$0xff]
    %v58 = vld [vmem:[#allocation2 + $0x8] sm:$0xff]
    %v59 = vld [vmem:[#allocation2 + $0x10] sm:$0xff]
    %v60 = vld [vmem:[#allocation2 + $0x18] sm:$0xff]
    %v61 = vld [vmem:[#allocation2 + $0x20] sm:$0x3]
    %v67 = vcombine.high %v57, %v57
    %v69 = vunpack.c.l.s4 1983009808
    %v70 = vunpack.c.0.s8 %v69
    %v71 = vlaneseq
    %v72 = vshrl.u32 %v71, 7
    %v73 = vsub.s32 %v70, %v72
    %v74 = vrot.slane %v57, %v73
    %v76 = vunpack.c.l.s4 1983009808
    %v77 = vunpack.c.0.s8 %v76
    %v78 = vlaneseq
    %v79 = vshrl.u32 %v78, 7
    %v80 = vsub.s32 %v77, %v79
    %v81 = vrot.slane %v67, %v80
    %v82 = vcombine.high %v74, %v74
    %v83 = vcombine.high %v81, %v81
    %v84 = vcombine.high %v58, %v58
    %v86 = vunpack.c.l.s4 1983009808
    %v87 = vunpack.c.0.s8 %v86
    %v88 = vlaneseq
    %v89 = vshrl.u32 %v88, 7
    %v90 = vsub.s32 %v87, %v89
    %v91 = vrot.slane %v58, %v90
    %v93 = vunpack.c.l.s4 1983009808
    %v94 = vunpack.c.0.s8 %v93
    %v95 = vlaneseq
    %v96 = vshrl.u32 %v95, 7
    %v97 = vsub.s32 %v94, %v96
    %v98 = vrot.slane %v84, %v97
    %v99 = vcombine.high %v91, %v91
    %v100 = vcombine.high %v98, %v98
    %v101 = vcombine.high %v59, %v59
    %v103 = vunpack.c.l.s4 1983009808
    %v104 = vunpack.c.0.s8 %v103
    %v105 = vlaneseq
    %v106 = vshrl.u32 %v105, 7
    %v107 = vsub.s32 %v104, %v106
    %v108 = vrot.slane %v59, %v107
    %v110 = vunpack.c.l.s4 1983009808
    %v111 = vunpack.c.0.s8 %v110
    %v112 = vlaneseq
    %v113 = vshrl.u32 %v112, 7
    %v114 = vsub.s32 %v111, %v113
    %v115 = vrot.slane %v101, %v114
    %v116 = vcombine.high %v108, %v108
    %v117 = vcombine.high %v115, %v115
    %v118 = vcombine.high %v60, %v60
    %v120 = vunpack.c.l.s4 1983009808
    %v121 = vunpack.c.0.s8 %v120
    %v122 = vlaneseq
    %v123 = vshrl.u32 %v122, 7
    %v124 = vsub.s32 %v121, %v123
    %v125 = vrot.slane %v60, %v124
    %v127 = vunpack.c.l.s4 1983009808
    %v128 = vunpack.c.0.s8 %v127
    %v129 = vlaneseq
    %v130 = vshrl.u32 %v129, 7
    %v131 = vsub.s32 %v128, %v130
    %v132 = vrot.slane %v118, %v131
    %v133 = vcombine.high %v125, %v125
    %v134 = vcombine.high %v132, %v132
    %v136 = vunpack.c.l.s4 1983009808
    %v137 = vunpack.c.0.s8 %v136
    %v138 = vlaneseq
    %v139 = vshrl.u32 %v138, 7
    %v140 = vsub.s32 %v137, %v139
    %v141 = vrot.slane %v61, %v140
    %159 = vrot.lane.b32.xlu0 %v74, 112
    %v160 = vpop.permute.xlu0 %159
    %161 = vrot.lane.b32.xlu0 %v82, 112
    %v162 = vpop.permute.xlu0 %161
    %163 = vrot.lane.b32.xlu0 %v81, 112
    %v164 = vpop.permute.xlu0 %163
    %165 = vrot.lane.b32.xlu0 %v83, 112
    %v166 = vpop.permute.xlu0 %165
    %167 = vrot.lane.b32.xlu0 %v91, 112
    %v168 = vpop.permute.xlu0 %167
    %169 = vrot.lane.b32.xlu0 %v99, 112
    %v170 = vpop.permute.xlu0 %169
    %171 = vrot.lane.b32.xlu0 %v98, 112
    %v172 = vpop.permute.xlu0 %171
    %173 = vrot.lane.b32.xlu0 %v100, 112
    %v174 = vpop.permute.xlu0 %173
    %175 = vrot.lane.b32.xlu0 %v108, 112
    %v176 = vpop.permute.xlu0 %175
    %177 = vrot.lane.b32.xlu0 %v116, 112
    %v178 = vpop.permute.xlu0 %177
    %179 = vrot.lane.b32.xlu0 %v115, 112
    %v180 = vpop.permute.xlu0 %179
    %181 = vrot.lane.b32.xlu0 %v117, 112
    %v182 = vpop.permute.xlu0 %181
    %183 = vrot.lane.b32.xlu0 %v125, 112
    %v184 = vpop.permute.xlu0 %183
    %185 = vrot.lane.b32.xlu0 %v133, 112
    %v186 = vpop.permute.xlu0 %185
    %187 = vrot.lane.b32.xlu0 %v132, 112
    %v188 = vpop.permute.xlu0 %187
    %189 = vrot.lane.b32.xlu0 %v134, 112
    %v190 = vpop.permute.xlu0 %189
    %191 = vrot.lane.b32.xlu0 %v141, 112
    %v192 = vpop.permute.xlu0 %191
    %v193 = vlaneseq
    %v194 = vand.u32 %v193, 127
    %vm195 = vcmp.lt.s32.totalorder %v194, 112
    %v196 = vsel %vm195, %v190, %v192
    %v197 = vsel %vm195, %v188, %v190
    %v198 = vsel %vm195, %v186, %v188
    %v199 = vsel %vm195, %v184, %v186
    %v200 = vsel %vm195, %v182, %v184
    %v201 = vsel %vm195, %v180, %v182
    %v202 = vsel %vm195, %v178, %v180
    %v203 = vsel %vm195, %v176, %v178
    %v204 = vsel %vm195, %v174, %v176
    %v205 = vsel %vm195, %v172, %v174
    %v206 = vsel %vm195, %v170, %v172
    %v207 = vsel %vm195, %v168, %v170
    %v208 = vsel %vm195, %v166, %v168
    %v209 = vsel %vm195, %v164, %v166
    %v210 = vsel %vm195, %v162, %v164
    %v211 = vsel %vm195, %v160, %v162
    %v212 = vsel %vm195, %v192, %v160
    %213 = vrot.lane.b32.xlu0 %v74, 16
    %v214 = vpop.permute.xlu0 %213
    %215 = vrot.lane.b32.xlu0 %v82, 16
    %v216 = vpop.permute.xlu0 %215
    %217 = vrot.lane.b32.xlu0 %v81, 16
    %v218 = vpop.permute.xlu0 %217
    %219 = vrot.lane.b32.xlu0 %v83, 16
    %v220 = vpop.permute.xlu0 %219
    %221 = vrot.lane.b32.xlu0 %v91, 16
    %v222 = vpop.permute.xlu0 %221
    %223 = vrot.lane.b32.xlu0 %v99, 16
    %v224 = vpop.permute.xlu0 %223
    %225 = vrot.lane.b32.xlu0 %v98, 16
    %v226 = vpop.permute.xlu0 %225
    %227 = vrot.lane.b32.xlu0 %v100, 16
    %v228 = vpop.permute.xlu0 %227
    %229 = vrot.lane.b32.xlu0 %v108, 16
    %v230 = vpop.permute.xlu0 %229
    %231 = vrot.lane.b32.xlu0 %v116, 16
    %v232 = vpop.permute.xlu0 %231
    %233 = vrot.lane.b32.xlu0 %v115, 16
    %v234 = vpop.permute.xlu0 %233
    %235 = vrot.lane.b32.xlu0 %v117, 16
    %v236 = vpop.permute.xlu0 %235
    %237 = vrot.lane.b32.xlu0 %v125, 16
    %v238 = vpop.permute.xlu0 %237
    %239 = vrot.lane.b32.xlu0 %v133, 16
    %v240 = vpop.permute.xlu0 %239
    %241 = vrot.lane.b32.xlu0 %v132, 16
    %v242 = vpop.permute.xlu0 %241
    %243 = vrot.lane.b32.xlu0 %v134, 16
    %v244 = vpop.permute.xlu0 %243
    %245 = vrot.lane.b32.xlu0 %v141, 16
    %v246 = vpop.permute.xlu0 %245
    %vm247 = vcmp.lt.s32.totalorder %v194, 16
    %v248 = vsel %vm247, %v244, %v246
    %v249 = vsel %vm247, %v242, %v244
    %v250 = vsel %vm247, %v240, %v242
    %v251 = vsel %vm247, %v238, %v240
    %v252 = vsel %vm247, %v236, %v238
    %v253 = vsel %vm247, %v234, %v236
    %v254 = vsel %vm247, %v232, %v234
    %v255 = vsel %vm247, %v230, %v232
    %v256 = vsel %vm247, %v228, %v230
    %v257 = vsel %vm247, %v226, %v228
    %v258 = vsel %vm247, %v224, %v226
    %v259 = vsel %vm247, %v222, %v224
    %v260 = vsel %vm247, %v220, %v222
    %v261 = vsel %vm247, %v218, %v220
    %v262 = vsel %vm247, %v216, %v218
    %v263 = vsel %vm247, %v214, %v216
    %v264 = vsel %vm247, %v246, %v214
    %v268 = vlaneseq
    %v269 = vshrl.u32 %v268, 7
    %v270 = vsub.s32 0, %v269
    %v271 = vrot.slane %v48, %v270
    %v272 = vlaneseq
    %v273 = vshrl.u32 %v272, 7
    %v274 = vsub.s32 1, %v273
    %v275 = vrot.slane %v48, %v274
    %v276 = vlaneseq
    %v277 = vshrl.u32 %v276, 7
    %v278 = vsub.s32 2, %v277
    %v279 = vrot.slane %v48, %v278
    %v280 = vlaneseq
    %v281 = vshrl.u32 %v280, 7
    %v282 = vsub.s32 3, %v281
    %v283 = vrot.slane %v48, %v282
    %v284 = vlaneseq
    %v285 = vshrl.u32 %v284, 7
    %v286 = vsub.s32 4, %v285
    %v287 = vrot.slane %v48, %v286
    %v288 = vlaneseq
    %v289 = vshrl.u32 %v288, 7
    %v290 = vsub.s32 5, %v289
    %v291 = vrot.slane %v48, %v290
    %v292 = vlaneseq
    %v293 = vshrl.u32 %v292, 7
    %v294 = vsub.s32 6, %v293
    %v295 = vrot.slane %v48, %v294
    %v296 = vlaneseq
    %v297 = vshrl.u32 %v296, 7
    %v298 = vsub.s32 7, %v297
    %v299 = vrot.slane %v48, %v298
    %v300 = vlaneseq
    %v301 = vshrl.u32 %v300, 7
    %v302 = vsub.s32 0, %v301
    %v303 = vrot.slane %v49, %v302
    %v304 = vlaneseq
    %v305 = vshrl.u32 %v304, 7
    %v306 = vsub.s32 1, %v305
    %v307 = vrot.slane %v49, %v306
    %v308 = vlaneseq
    %v309 = vshrl.u32 %v308, 7
    %v310 = vsub.s32 2, %v309
    %v311 = vrot.slane %v49, %v310
    %v312 = vlaneseq
    %v313 = vshrl.u32 %v312, 7
    %v314 = vsub.s32 3, %v313
    %v315 = vrot.slane %v49, %v314
    %v316 = vlaneseq
    %v317 = vshrl.u32 %v316, 7
    %v318 = vsub.s32 4, %v317
    %v319 = vrot.slane %v49, %v318
    %v320 = vlaneseq
    %v321 = vshrl.u32 %v320, 7
    %v322 = vsub.s32 5, %v321
    %v323 = vrot.slane %v49, %v322
    %v324 = vlaneseq
    %v325 = vshrl.u32 %v324, 7
    %v326 = vsub.s32 6, %v325
    %v327 = vrot.slane %v49, %v326
    %v328 = vlaneseq
    %v329 = vshrl.u32 %v328, 7
    %v330 = vsub.s32 7, %v329
    %v331 = vrot.slane %v49, %v330
    %v332 = vlaneseq
    %v333 = vshrl.u32 %v332, 7
    %v334 = vsub.s32 0, %v333
    %v335 = vrot.slane %v50, %v334
    %v336 = vcombine.low %v271, %v275
    %v337 = vcombine.low %v279, %v283
    %v339 = vunpack.c.l.s4 1983009808
    %v340 = vunpack.c.0.s8 %v339
    %v341 = vlaneseq
    %v342 = vshrl.u32 %v341, 7
    %v343 = vsub.s32 %v340, %v342
    %v344 = vrot.slane %v336, %v343
    %v346 = vunpack.c.l.s4 1983009808
    %v347 = vunpack.c.0.s8 %v346
    %v348 = vlaneseq
    %v349 = vshrl.u32 %v348, 7
    %v350 = vsub.s32 %v347, %v349
    %v351 = vrot.slane %v337, %v350
    %v352 = vcombine.low %v344, %v351
    %v353 = vcombine.low %v287, %v291
    %v354 = vcombine.low %v295, %v299
    %v356 = vunpack.c.l.s4 1983009808
    %v357 = vunpack.c.0.s8 %v356
    %v358 = vlaneseq
    %v359 = vshrl.u32 %v358, 7
    %v360 = vsub.s32 %v357, %v359
    %v361 = vrot.slane %v353, %v360
    %v363 = vunpack.c.l.s4 1983009808
    %v364 = vunpack.c.0.s8 %v363
    %v365 = vlaneseq
    %v366 = vshrl.u32 %v365, 7
    %v367 = vsub.s32 %v364, %v366
    %v368 = vrot.slane %v354, %v367
    %v369 = vcombine.low %v361, %v368
    %v370 = vcombine.low %v303, %v307
    %v371 = vcombine.low %v311, %v315
    %v373 = vunpack.c.l.s4 1983009808
    %v374 = vunpack.c.0.s8 %v373
    %v375 = vlaneseq
    %v376 = vshrl.u32 %v375, 7
    %v377 = vsub.s32 %v374, %v376
    %v378 = vrot.slane %v370, %v377
    %v380 = vunpack.c.l.s4 1983009808
    %v381 = vunpack.c.0.s8 %v380
    %v382 = vlaneseq
    %v383 = vshrl.u32 %v382, 7
    %v384 = vsub.s32 %v381, %v383
    %v385 = vrot.slane %v371, %v384
    %v386 = vcombine.low %v378, %v385
    %v387 = vcombine.low %v319, %v323
    %v388 = vcombine.low %v327, %v331
    %v390 = vunpack.c.l.s4 1983009808
    %v391 = vunpack.c.0.s8 %v390
    %v392 = vlaneseq
    %v393 = vshrl.u32 %v392, 7
    %v394 = vsub.s32 %v391, %v393
    %v395 = vrot.slane %v387, %v394
    %v397 = vunpack.c.l.s4 1983009808
    %v398 = vunpack.c.0.s8 %v397
    %v399 = vlaneseq
    %v400 = vshrl.u32 %v399, 7
    %v401 = vsub.s32 %v398, %v400
    %v402 = vrot.slane %v388, %v401
    %v403 = vcombine.low %v395, %v402
    %v405 = vunpack.c.l.s4 1983009808
    %v406 = vunpack.c.0.s8 %v405
    %v407 = vlaneseq
    %v408 = vshrl.u32 %v407, 7
    %v409 = vsub.s32 %v406, %v408
    %v410 = vrot.slane %v335, %v409
    %v416 = vmul.f32 %v57, %v352
    %v417 = vmul.f32 %v58, %v369
    %v418 = vmul.f32 %v59, %v386
    %v419 = vmul.f32 %v60, %v403
    %v420 = vmul.f32 %v61, %v410
    %v424 = vlaneseq
    %v425 = vshrl.u32 %v424, 7
    %v426 = vsub.s32 0, %v425
    %v427 = vrot.slane %v51, %v426
    %v428 = vlaneseq
    %v429 = vshrl.u32 %v428, 7
    %v430 = vsub.s32 1, %v429
    %v431 = vrot.slane %v51, %v430
    %v432 = vlaneseq
    %v433 = vshrl.u32 %v432, 7
    %v434 = vsub.s32 2, %v433
    %v435 = vrot.slane %v51, %v434
    %v436 = vlaneseq
    %v437 = vshrl.u32 %v436, 7
    %v438 = vsub.s32 3, %v437
    %v439 = vrot.slane %v51, %v438
    %v440 = vlaneseq
    %v441 = vshrl.u32 %v440, 7
    %v442 = vsub.s32 4, %v441
    %v443 = vrot.slane %v51, %v442
    %v444 = vlaneseq
    %v445 = vshrl.u32 %v444, 7
    %v446 = vsub.s32 5, %v445
    %v447 = vrot.slane %v51, %v446
    %v448 = vlaneseq
    %v449 = vshrl.u32 %v448, 7
    %v450 = vsub.s32 6, %v449
    %v451 = vrot.slane %v51, %v450
    %v452 = vlaneseq
    %v453 = vshrl.u32 %v452, 7
    %v454 = vsub.s32 7, %v453
    %v455 = vrot.slane %v51, %v454
    %v456 = vlaneseq
    %v457 = vshrl.u32 %v456, 7
    %v458 = vsub.s32 0, %v457
    %v459 = vrot.slane %v52, %v458
    %v460 = vlaneseq
    %v461 = vshrl.u32 %v460, 7
    %v462 = vsub.s32 1, %v461
    %v463 = vrot.slane %v52, %v462
    %v464 = vlaneseq
    %v465 = vshrl.u32 %v464, 7
    %v466 = vsub.s32 2, %v465
    %v467 = vrot.slane %v52, %v466
    %v468 = vlaneseq
    %v469 = vshrl.u32 %v468, 7
    %v470 = vsub.s32 3, %v469
    %v471 = vrot.slane %v52, %v470
    %v472 = vlaneseq
    %v473 = vshrl.u32 %v472, 7
    %v474 = vsub.s32 4, %v473
    %v475 = vrot.slane %v52, %v474
    %v476 = vlaneseq
    %v477 = vshrl.u32 %v476, 7
    %v478 = vsub.s32 5, %v477
    %v479 = vrot.slane %v52, %v478
    %v480 = vlaneseq
    %v481 = vshrl.u32 %v480, 7
    %v482 = vsub.s32 6, %v481
    %v483 = vrot.slane %v52, %v482
    %v484 = vlaneseq
    %v485 = vshrl.u32 %v484, 7
    %v486 = vsub.s32 7, %v485
    %v487 = vrot.slane %v52, %v486
    %v488 = vlaneseq
    %v489 = vshrl.u32 %v488, 7
    %v490 = vsub.s32 0, %v489
    %v491 = vrot.slane %v53, %v490
    %v509 = vmul.f32 %v211, %v427
    %v510 = vmul.f32 %v210, %v431
    %v511 = vmul.f32 %v209, %v435
    %v512 = vmul.f32 %v208, %v439
    %v513 = vmul.f32 %v207, %v443
    %v514 = vmul.f32 %v206, %v447
    %v515 = vmul.f32 %v205, %v451
    %v516 = vmul.f32 %v204, %v455
    %v517 = vmul.f32 %v203, %v459
    %v518 = vmul.f32 %v202, %v463
    %v519 = vmul.f32 %v201, %v467
    %v520 = vmul.f32 %v200, %v471
    %v521 = vmul.f32 %v199, %v475
    %v522 = vmul.f32 %v198, %v479
    %v523 = vmul.f32 %v197, %v483
    %v524 = vmul.f32 %v196, %v487
    %v525 = vmul.f32 %v212, %v491
    %v543 = vcombine.low %v509, %v510
    %v544 = vcombine.low %v511, %v512
    %v546 = vunpack.c.l.s4 1983009808
    %v547 = vunpack.c.0.s8 %v546
    %v548 = vlaneseq
    %v549 = vshrl.u32 %v548, 7
    %v550 = vsub.s32 %v547, %v549
    %v551 = vrot.slane %v543, %v550
    %v553 = vunpack.c.l.s4 1983009808
    %v554 = vunpack.c.0.s8 %v553
    %v555 = vlaneseq
    %v556 = vshrl.u32 %v555, 7
    %v557 = vsub.s32 %v554, %v556
    %v558 = vrot.slane %v544, %v557
    %v559 = vcombine.low %v551, %v558
    %v560 = vcombine.low %v513, %v514
    %v561 = vcombine.low %v515, %v516
    %v563 = vunpack.c.l.s4 1983009808
    %v564 = vunpack.c.0.s8 %v563
    %v565 = vlaneseq
    %v566 = vshrl.u32 %v565, 7
    %v567 = vsub.s32 %v564, %v566
    %v568 = vrot.slane %v560, %v567
    %v570 = vunpack.c.l.s4 1983009808
    %v571 = vunpack.c.0.s8 %v570
    %v572 = vlaneseq
    %v573 = vshrl.u32 %v572, 7
    %v574 = vsub.s32 %v571, %v573
    %v575 = vrot.slane %v561, %v574
    %v576 = vcombine.low %v568, %v575
    %v577 = vcombine.low %v517, %v518
    %v578 = vcombine.low %v519, %v520
    %v580 = vunpack.c.l.s4 1983009808
    %v581 = vunpack.c.0.s8 %v580
    %v582 = vlaneseq
    %v583 = vshrl.u32 %v582, 7
    %v584 = vsub.s32 %v581, %v583
    %v585 = vrot.slane %v577, %v584
    %v587 = vunpack.c.l.s4 1983009808
    %v588 = vunpack.c.0.s8 %v587
    %v589 = vlaneseq
    %v590 = vshrl.u32 %v589, 7
    %v591 = vsub.s32 %v588, %v590
    %v592 = vrot.slane %v578, %v591
    %v593 = vcombine.low %v585, %v592
    %v594 = vcombine.low %v521, %v522
    %v595 = vcombine.low %v523, %v524
    %v597 = vunpack.c.l.s4 1983009808
    %v598 = vunpack.c.0.s8 %v597
    %v599 = vlaneseq
    %v600 = vshrl.u32 %v599, 7
    %v601 = vsub.s32 %v598, %v600
    %v602 = vrot.slane %v594, %v601
    %v604 = vunpack.c.l.s4 1983009808
    %v605 = vunpack.c.0.s8 %v604
    %v606 = vlaneseq
    %v607 = vshrl.u32 %v606, 7
    %v608 = vsub.s32 %v605, %v607
    %v609 = vrot.slane %v595, %v608
    %v610 = vcombine.low %v602, %v609
    %v612 = vunpack.c.l.s4 1983009808
    %v613 = vunpack.c.0.s8 %v612
    %v614 = vlaneseq
    %v615 = vshrl.u32 %v614, 7
    %v616 = vsub.s32 %v613, %v615
    %v617 = vrot.slane %v525, %v616
    %v623 = vadd.f32 %v416, %v559
    %v624 = vadd.f32 %v417, %v576
    %v625 = vadd.f32 %v418, %v593
    %v626 = vadd.f32 %v419, %v610
    %v627 = vadd.f32 %v420, %v617
    %v631 = vlaneseq
    %v632 = vshrl.u32 %v631, 7
    %v633 = vsub.s32 0, %v632
    %v634 = vrot.slane %v54, %v633
    %v635 = vlaneseq
    %v636 = vshrl.u32 %v635, 7
    %v637 = vsub.s32 1, %v636
    %v638 = vrot.slane %v54, %v637
    %v639 = vlaneseq
    %v640 = vshrl.u32 %v639, 7
    %v641 = vsub.s32 2, %v640
    %v642 = vrot.slane %v54, %v641
    %v643 = vlaneseq
    %v644 = vshrl.u32 %v643, 7
    %v645 = vsub.s32 3, %v644
    %v646 = vrot.slane %v54, %v645
    %v647 = vlaneseq
    %v648 = vshrl.u32 %v647, 7
    %v649 = vsub.s32 4, %v648
    %v650 = vrot.slane %v54, %v649
    %v651 = vlaneseq
    %v652 = vshrl.u32 %v651, 7
    %v653 = vsub.s32 5, %v652
    %v654 = vrot.slane %v54, %v653
    %v655 = vlaneseq
    %v656 = vshrl.u32 %v655, 7
    %v657 = vsub.s32 6, %v656
    %v658 = vrot.slane %v54, %v657
    %v659 = vlaneseq
    %v660 = vshrl.u32 %v659, 7
    %v661 = vsub.s32 7, %v660
    %v662 = vrot.slane %v54, %v661
    %v663 = vlaneseq
    %v664 = vshrl.u32 %v663, 7
    %v665 = vsub.s32 0, %v664
    %v666 = vrot.slane %v55, %v665
    %v667 = vlaneseq
    %v668 = vshrl.u32 %v667, 7
    %v669 = vsub.s32 1, %v668
    %v670 = vrot.slane %v55, %v669
    %v671 = vlaneseq
    %v672 = vshrl.u32 %v671, 7
    %v673 = vsub.s32 2, %v672
    %v674 = vrot.slane %v55, %v673
    %v675 = vlaneseq
    %v676 = vshrl.u32 %v675, 7
    %v677 = vsub.s32 3, %v676
    %v678 = vrot.slane %v55, %v677
    %v679 = vlaneseq
    %v680 = vshrl.u32 %v679, 7
    %v681 = vsub.s32 4, %v680
    %v682 = vrot.slane %v55, %v681
    %v683 = vlaneseq
    %v684 = vshrl.u32 %v683, 7
    %v685 = vsub.s32 5, %v684
    %v686 = vrot.slane %v55, %v685
    %v687 = vlaneseq
    %v688 = vshrl.u32 %v687, 7
    %v689 = vsub.s32 6, %v688
    %v690 = vrot.slane %v55, %v689
    %v691 = vlaneseq
    %v692 = vshrl.u32 %v691, 7
    %v693 = vsub.s32 7, %v692
    %v694 = vrot.slane %v55, %v693
    %v695 = vlaneseq
    %v696 = vshrl.u32 %v695, 7
    %v697 = vsub.s32 0, %v696
    %v698 = vrot.slane %v56, %v697
    %v716 = vmul.f32 %v264, %v634
    %v717 = vmul.f32 %v263, %v638
    %v718 = vmul.f32 %v262, %v642
    %v719 = vmul.f32 %v261, %v646
    %v720 = vmul.f32 %v260, %v650
    %v721 = vmul.f32 %v259, %v654
    %v722 = vmul.f32 %v258, %v658
    %v723 = vmul.f32 %v257, %v662
    %v724 = vmul.f32 %v256, %v666
    %v725 = vmul.f32 %v255, %v670
    %v726 = vmul.f32 %v254, %v674
    %v727 = vmul.f32 %v253, %v678
    %v728 = vmul.f32 %v252, %v682
    %v729 = vmul.f32 %v251, %v686
    %v730 = vmul.f32 %v250, %v690
    %v731 = vmul.f32 %v249, %v694
    %v732 = vmul.f32 %v248, %v698
    %v750 = vcombine.low %v716, %v717
    %v751 = vcombine.low %v718, %v719
    %v753 = vunpack.c.l.s4 1983009808
    %v754 = vunpack.c.0.s8 %v753
    %v755 = vlaneseq
    %v756 = vshrl.u32 %v755, 7
    %v757 = vsub.s32 %v754, %v756
    %v758 = vrot.slane %v750, %v757
    %v760 = vunpack.c.l.s4 1983009808
    %v761 = vunpack.c.0.s8 %v760
    %v762 = vlaneseq
    %v763 = vshrl.u32 %v762, 7
    %v764 = vsub.s32 %v761, %v763
    %v765 = vrot.slane %v751, %v764
    %v766 = vcombine.low %v758, %v765
    %v767 = vcombine.low %v720, %v721
    %v768 = vcombine.low %v722, %v723
    %v770 = vunpack.c.l.s4 1983009808
    %v771 = vunpack.c.0.s8 %v770
    %v772 = vlaneseq
    %v773 = vshrl.u32 %v772, 7
    %v774 = vsub.s32 %v771, %v773
    %v775 = vrot.slane %v767, %v774
    %v777 = vunpack.c.l.s4 1983009808
    %v778 = vunpack.c.0.s8 %v777
    %v779 = vlaneseq
    %v780 = vshrl.u32 %v779, 7
    %v781 = vsub.s32 %v778, %v780
    %v782 = vrot.slane %v768, %v781
    %v783 = vcombine.low %v775, %v782
    %v784 = vcombine.low %v724, %v725
    %v785 = vcombine.low %v726, %v727
    %v787 = vunpack.c.l.s4 1983009808
    %v788 = vunpack.c.0.s8 %v787
    %v789 = vlaneseq
    %v790 = vshrl.u32 %v789, 7
    %v791 = vsub.s32 %v788, %v790
    %v792 = vrot.slane %v784, %v791
    %v794 = vunpack.c.l.s4 1983009808
    %v795 = vunpack.c.0.s8 %v794
    %v796 = vlaneseq
    %v797 = vshrl.u32 %v796, 7
    %v798 = vsub.s32 %v795, %v797
    %v799 = vrot.slane %v785, %v798
    %v800 = vcombine.low %v792, %v799
    %v801 = vcombine.low %v728, %v729
    %v802 = vcombine.low %v730, %v731
    %v804 = vunpack.c.l.s4 1983009808
    %v805 = vunpack.c.0.s8 %v804
    %v806 = vlaneseq
    %v807 = vshrl.u32 %v806, 7
    %v808 = vsub.s32 %v805, %v807
    %v809 = vrot.slane %v801, %v808
    %v811 = vunpack.c.l.s4 1983009808
    %v812 = vunpack.c.0.s8 %v811
    %v813 = vlaneseq
    %v814 = vshrl.u32 %v813, 7
    %v815 = vsub.s32 %v812, %v814
    %v816 = vrot.slane %v802, %v815
    %v817 = vcombine.low %v809, %v816
    %v819 = vunpack.c.l.s4 1983009808
    %v820 = vunpack.c.0.s8 %v819
    %v821 = vlaneseq
    %v822 = vshrl.u32 %v821, 7
    %v823 = vsub.s32 %v820, %v822
    %v824 = vrot.slane %v732, %v823
    %v830 = vadd.f32 %v623, %v766
    %v831 = vadd.f32 %v624, %v783
    %v832 = vadd.f32 %v625, %v800
    %v833 = vadd.f32 %v626, %v817
    %v834 = vadd.f32 %v627, %v824
    %835 = vst [vmem:[#allocation7] sm:$0xff] %v830
    %836 = vst [vmem:[#allocation7 + $0x8] sm:$0xff] %v831
    %837 = vst [vmem:[#allocation7 + $0x10] sm:$0xff] %v832
    %838 = vst [vmem:[#allocation7 + $0x18] sm:$0xff] %v833
    %839 = vst [vmem:[#allocation7 + $0x20] sm:$0x3] %v834
    %v840 = vld [vmem:[#allocation5] sm:$0xff]
    %v841 = vld [vmem:[#allocation5 + $0x8] sm:$0xff]
    %v842 = vld [vmem:[#allocation5 + $0x10] sm:$0xff]
    %v843 = vld [vmem:[#allocation5 + $0x18] sm:$0xff]
    %v844 = vld [vmem:[#allocation5 + $0x20] sm:$0x3]
    %v850 = vcombine.high %v840, %v840
    %v852 = vunpack.c.l.s4 1983009808
    %v853 = vunpack.c.0.s8 %v852
    %v854 = vlaneseq
    %v855 = vshrl.u32 %v854, 7
    %v856 = vsub.s32 %v853, %v855
    %v857 = vrot.slane %v840, %v856
    %v859 = vunpack.c.l.s4 1983009808
    %v860 = vunpack.c.0.s8 %v859
    %v861 = vlaneseq
    %v862 = vshrl.u32 %v861, 7
    %v863 = vsub.s32 %v860, %v862
    %v864 = vrot.slane %v850, %v863
    %v865 = vcombine.high %v857, %v857
    %v866 = vcombine.high %v864, %v864
    %v867 = vcombine.high %v841, %v841
    %v869 = vunpack.c.l.s4 1983009808
    %v870 = vunpack.c.0.s8 %v869
    %v871 = vlaneseq
    %v872 = vshrl.u32 %v871, 7
    %v873 = vsub.s32 %v870, %v872
    %v874 = vrot.slane %v841, %v873
    %v876 = vunpack.c.l.s4 1983009808
    %v877 = vunpack.c.0.s8 %v876
    %v878 = vlaneseq
    %v879 = vshrl.u32 %v878, 7
    %v880 = vsub.s32 %v877, %v879
    %v881 = vrot.slane %v867, %v880
    %v882 = vcombine.high %v874, %v874
    %v883 = vcombine.high %v881, %v881
    %v884 = vcombine.high %v842, %v842
    %v886 = vunpack.c.l.s4 1983009808
    %v887 = vunpack.c.0.s8 %v886
    %v888 = vlaneseq
    %v889 = vshrl.u32 %v888, 7
    %v890 = vsub.s32 %v887, %v889
    %v891 = vrot.slane %v842, %v890
    %v893 = vunpack.c.l.s4 1983009808
    %v894 = vunpack.c.0.s8 %v893
    %v895 = vlaneseq
    %v896 = vshrl.u32 %v895, 7
    %v897 = vsub.s32 %v894, %v896
    %v898 = vrot.slane %v884, %v897
    %v899 = vcombine.high %v891, %v891
    %v900 = vcombine.high %v898, %v898
    %v901 = vcombine.high %v843, %v843
    %v903 = vunpack.c.l.s4 1983009808
    %v904 = vunpack.c.0.s8 %v903
    %v905 = vlaneseq
    %v906 = vshrl.u32 %v905, 7
    %v907 = vsub.s32 %v904, %v906
    %v908 = vrot.slane %v843, %v907
    %v910 = vunpack.c.l.s4 1983009808
    %v911 = vunpack.c.0.s8 %v910
    %v912 = vlaneseq
    %v913 = vshrl.u32 %v912, 7
    %v914 = vsub.s32 %v911, %v913
    %v915 = vrot.slane %v901, %v914
    %v916 = vcombine.high %v908, %v908
    %v917 = vcombine.high %v915, %v915
    %v919 = vunpack.c.l.s4 1983009808
    %v920 = vunpack.c.0.s8 %v919
    %v921 = vlaneseq
    %v922 = vshrl.u32 %v921, 7
    %v923 = vsub.s32 %v920, %v922
    %v924 = vrot.slane %v844, %v923
    %942 = vrot.lane.b32.xlu0 %v857, 112
    %v943 = vpop.permute.xlu0 %942
    %944 = vrot.lane.b32.xlu0 %v865, 112
    %v945 = vpop.permute.xlu0 %944
    %946 = vrot.lane.b32.xlu0 %v864, 112
    %v947 = vpop.permute.xlu0 %946
    %948 = vrot.lane.b32.xlu0 %v866, 112
    %v949 = vpop.permute.xlu0 %948
    %950 = vrot.lane.b32.xlu0 %v874, 112
    %v951 = vpop.permute.xlu0 %950
    %952 = vrot.lane.b32.xlu0 %v882, 112
    %v953 = vpop.permute.xlu0 %952
    %954 = vrot.lane.b32.xlu0 %v881, 112
    %v955 = vpop.permute.xlu0 %954
    %956 = vrot.lane.b32.xlu0 %v883, 112
    %v957 = vpop.permute.xlu0 %956
    %958 = vrot.lane.b32.xlu0 %v891, 112
    %v959 = vpop.permute.xlu0 %958
    %960 = vrot.lane.b32.xlu0 %v899, 112
    %v961 = vpop.permute.xlu0 %960
    %962 = vrot.lane.b32.xlu0 %v898, 112
    %v963 = vpop.permute.xlu0 %962
    %964 = vrot.lane.b32.xlu0 %v900, 112
    %v965 = vpop.permute.xlu0 %964
    %966 = vrot.lane.b32.xlu0 %v908, 112
    %v967 = vpop.permute.xlu0 %966
    %968 = vrot.lane.b32.xlu0 %v916, 112
    %v969 = vpop.permute.xlu0 %968
    %970 = vrot.lane.b32.xlu0 %v915, 112
    %v971 = vpop.permute.xlu0 %970
    %972 = vrot.lane.b32.xlu0 %v917, 112
    %v973 = vpop.permute.xlu0 %972
    %974 = vrot.lane.b32.xlu0 %v924, 112
    %v975 = vpop.permute.xlu0 %974
    %v976 = vsel %vm195, %v973, %v975
    %v977 = vsel %vm195, %v971, %v973
    %v978 = vsel %vm195, %v969, %v971
    %v979 = vsel %vm195, %v967, %v969
    %v980 = vsel %vm195, %v965, %v967
    %v981 = vsel %vm195, %v963, %v965
    %v982 = vsel %vm195, %v961, %v963
    %v983 = vsel %vm195, %v959, %v961
    %v984 = vsel %vm195, %v957, %v959
    %v985 = vsel %vm195, %v955, %v957
    %v986 = vsel %vm195, %v953, %v955
    %v987 = vsel %vm195, %v951, %v953
    %v988 = vsel %vm195, %v949, %v951
    %v989 = vsel %vm195, %v947, %v949
    %v990 = vsel %vm195, %v945, %v947
    %v991 = vsel %vm195, %v943, %v945
    %v992 = vsel %vm195, %v975, %v943
    %993 = vrot.lane.b32.xlu0 %v857, 16
    %v994 = vpop.permute.xlu0 %993
    %995 = vrot.lane.b32.xlu0 %v865, 16
    %v996 = vpop.permute.xlu0 %995
    %997 = vrot.lane.b32.xlu0 %v864, 16
    %v998 = vpop.permute.xlu0 %997
    %999 = vrot.lane.b32.xlu0 %v866, 16
    %v1000 = vpop.permute.xlu0 %999
    %1001 = vrot.lane.b32.xlu0 %v874, 16
    %v1002 = vpop.permute.xlu0 %1001
    %1003 = vrot.lane.b32.xlu0 %v882, 16
    %v1004 = vpop.permute.xlu0 %1003
    %1005 = vrot.lane.b32.xlu0 %v881, 16
    %v1006 = vpop.permute.xlu0 %1005
    %1007 = vrot.lane.b32.xlu0 %v883, 16
    %v1008 = vpop.permute.xlu0 %1007
    %1009 = vrot.lane.b32.xlu0 %v891, 16
    %v1010 = vpop.permute.xlu0 %1009
    %1011 = vrot.lane.b32.xlu0 %v899, 16
    %v1012 = vpop.permute.xlu0 %1011
    %1013 = vrot.lane.b32.xlu0 %v898, 16
    %v1014 = vpop.permute.xlu0 %1013
    %1015 = vrot.lane.b32.xlu0 %v900, 16
    %v1016 = vpop.permute.xlu0 %1015
    %1017 = vrot.lane.b32.xlu0 %v908, 16
    %v1018 = vpop.permute.xlu0 %1017
    %1019 = vrot.lane.b32.xlu0 %v916, 16
    %v1020 = vpop.permute.xlu0 %1019
    %1021 = vrot.lane.b32.xlu0 %v915, 16
    %v1022 = vpop.permute.xlu0 %1021
    %1023 = vrot.lane.b32.xlu0 %v917, 16
    %v1024 = vpop.permute.xlu0 %1023
    %1025 = vrot.lane.b32.xlu0 %v924, 16
    %v1026 = vpop.permute.xlu0 %1025
    %v1027 = vsel %vm247, %v1024, %v1026
    %v1028 = vsel %vm247, %v1022, %v1024
    %v1029 = vsel %vm247, %v1020, %v1022
    %v1030 = vsel %vm247, %v1018, %v1020
    %v1031 = vsel %vm247, %v1016, %v1018
    %v1032 = vsel %vm247, %v1014, %v1016
    %v1033 = vsel %vm247, %v1012, %v1014
    %v1034 = vsel %vm247, %v1010, %v1012
    %v1035 = vsel %vm247, %v1008, %v1010
    %v1036 = vsel %vm247, %v1006, %v1008
    %v1037 = vsel %vm247, %v1004, %v1006
    %v1038 = vsel %vm247, %v1002, %v1004
    %v1039 = vsel %vm247, %v1000, %v1002
    %v1040 = vsel %vm247, %v998, %v1000
    %v1041 = vsel %vm247, %v996, %v998
    %v1042 = vsel %vm247, %v994, %v996
    %v1043 = vsel %vm247, %v1026, %v994
    %v1044 = vmul.f32 %v840, %v352
    %v1045 = vmul.f32 %v841, %v369
    %v1046 = vmul.f32 %v842, %v386
    %v1047 = vmul.f32 %v843, %v403
    %v1048 = vmul.f32 %v844, %v410
    %v1049 = vmul.f32 %v991, %v427
    %v1050 = vmul.f32 %v990, %v431
    %v1051 = vmul.f32 %v989, %v435
    %v1052 = vmul.f32 %v988, %v439
    %v1053 = vmul.f32 %v987, %v443
    %v1054 = vmul.f32 %v986, %v447
    %v1055 = vmul.f32 %v985, %v451
    %v1056 = vmul.f32 %v984, %v455
    %v1057 = vmul.f32 %v983, %v459
    %v1058 = vmul.f32 %v982, %v463
    %v1059 = vmul.f32 %v981, %v467
    %v1060 = vmul.f32 %v980, %v471
    %v1061 = vmul.f32 %v979, %v475
    %v1062 = vmul.f32 %v978, %v479
    %v1063 = vmul.f32 %v977, %v483
    %v1064 = vmul.f32 %v976, %v487
    %v1065 = vmul.f32 %v992, %v491
    %v1083 = vcombine.low %v1049, %v1050
    %v1084 = vcombine.low %v1051, %v1052
    %v1086 = vunpack.c.l.s4 1983009808
    %v1087 = vunpack.c.0.s8 %v1086
    %v1088 = vlaneseq
    %v1089 = vshrl.u32 %v1088, 7
    %v1090 = vsub.s32 %v1087, %v1089
    %v1091 = vrot.slane %v1083, %v1090
    %v1093 = vunpack.c.l.s4 1983009808
    %v1094 = vunpack.c.0.s8 %v1093
    %v1095 = vlaneseq
    %v1096 = vshrl.u32 %v1095, 7
    %v1097 = vsub.s32 %v1094, %v1096
    %v1098 = vrot.slane %v1084, %v1097
    %v1099 = vcombine.low %v1091, %v1098
    %v1100 = vcombine.low %v1053, %v1054
    %v1101 = vcombine.low %v1055, %v1056
    %v1103 = vunpack.c.l.s4 1983009808
    %v1104 = vunpack.c.0.s8 %v1103
    %v1105 = vlaneseq
    %v1106 = vshrl.u32 %v1105, 7
    %v1107 = vsub.s32 %v1104, %v1106
    %v1108 = vrot.slane %v1100, %v1107
    %v1110 = vunpack.c.l.s4 1983009808
    %v1111 = vunpack.c.0.s8 %v1110
    %v1112 = vlaneseq
    %v1113 = vshrl.u32 %v1112, 7
    %v1114 = vsub.s32 %v1111, %v1113
    %v1115 = vrot.slane %v1101, %v1114
    %v1116 = vcombine.low %v1108, %v1115
    %v1117 = vcombine.low %v1057, %v1058
    %v1118 = vcombine.low %v1059, %v1060
    %v1120 = vunpack.c.l.s4 1983009808
    %v1121 = vunpack.c.0.s8 %v1120
    %v1122 = vlaneseq
    %v1123 = vshrl.u32 %v1122, 7
    %v1124 = vsub.s32 %v1121, %v1123
    %v1125 = vrot.slane %v1117, %v1124
    %v1127 = vunpack.c.l.s4 1983009808
    %v1128 = vunpack.c.0.s8 %v1127
    %v1129 = vlaneseq
    %v1130 = vshrl.u32 %v1129, 7
    %v1131 = vsub.s32 %v1128, %v1130
    %v1132 = vrot.slane %v1118, %v1131
    %v1133 = vcombine.low %v1125, %v1132
    %v1134 = vcombine.low %v1061, %v1062
    %v1135 = vcombine.low %v1063, %v1064
    %v1137 = vunpack.c.l.s4 1983009808
    %v1138 = vunpack.c.0.s8 %v1137
    %v1139 = vlaneseq
    %v1140 = vshrl.u32 %v1139, 7
    %v1141 = vsub.s32 %v1138, %v1140
    %v1142 = vrot.slane %v1134, %v1141
    %v1144 = vunpack.c.l.s4 1983009808
    %v1145 = vunpack.c.0.s8 %v1144
    %v1146 = vlaneseq
    %v1147 = vshrl.u32 %v1146, 7
    %v1148 = vsub.s32 %v1145, %v1147
    %v1149 = vrot.slane %v1135, %v1148
    %v1150 = vcombine.low %v1142, %v1149
    %v1152 = vunpack.c.l.s4 1983009808
    %v1153 = vunpack.c.0.s8 %v1152
    %v1154 = vlaneseq
    %v1155 = vshrl.u32 %v1154, 7
    %v1156 = vsub.s32 %v1153, %v1155
    %v1157 = vrot.slane %v1065, %v1156
    %v1163 = vadd.f32 %v1044, %v1099
    %v1164 = vadd.f32 %v1045, %v1116
    %v1165 = vadd.f32 %v1046, %v1133
    %v1166 = vadd.f32 %v1047, %v1150
    %v1167 = vadd.f32 %v1048, %v1157
    %v1168 = vmul.f32 %v1043, %v634
    %v1169 = vmul.f32 %v1042, %v638
    %v1170 = vmul.f32 %v1041, %v642
    %v1171 = vmul.f32 %v1040, %v646
    %v1172 = vmul.f32 %v1039, %v650
    %v1173 = vmul.f32 %v1038, %v654
    %v1174 = vmul.f32 %v1037, %v658
    %v1175 = vmul.f32 %v1036, %v662
    %v1176 = vmul.f32 %v1035, %v666
    %v1177 = vmul.f32 %v1034, %v670
    %v1178 = vmul.f32 %v1033, %v674
    %v1179 = vmul.f32 %v1032, %v678
    %v1180 = vmul.f32 %v1031, %v682
    %v1181 = vmul.f32 %v1030, %v686
    %v1182 = vmul.f32 %v1029, %v690
    %v1183 = vmul.f32 %v1028, %v694
    %v1184 = vmul.f32 %v1027, %v698
    %v1202 = vcombine.low %v1168, %v1169
    %v1203 = vcombine.low %v1170, %v1171
    %v1205 = vunpack.c.l.s4 1983009808
    %v1206 = vunpack.c.0.s8 %v1205
    %v1207 = vlaneseq
    %v1208 = vshrl.u32 %v1207, 7
    %v1209 = vsub.s32 %v1206, %v1208
    %v1210 = vrot.slane %v1202, %v1209
    %v1212 = vunpack.c.l.s4 1983009808
    %v1213 = vunpack.c.0.s8 %v1212
    %v1214 = vlaneseq
    %v1215 = vshrl.u32 %v1214, 7
    %v1216 = vsub.s32 %v1213, %v1215
    %v1217 = vrot.slane %v1203, %v1216
    %v1218 = vcombine.low %v1210, %v1217
    %v1219 = vcombine.low %v1172, %v1173
    %v1220 = vcombine.low %v1174, %v1175
    %v1222 = vunpack.c.l.s4 1983009808
    %v1223 = vunpack.c.0.s8 %v1222
    %v1224 = vlaneseq
    %v1225 = vshrl.u32 %v1224, 7
    %v1226 = vsub.s32 %v1223, %v1225
    %v1227 = vrot.slane %v1219, %v1226
    %v1229 = vunpack.c.l.s4 1983009808
    %v1230 = vunpack.c.0.s8 %v1229
    %v1231 = vlaneseq
    %v1232 = vshrl.u32 %v1231, 7
    %v1233 = vsub.s32 %v1230, %v1232
    %v1234 = vrot.slane %v1220, %v1233
    %v1235 = vcombine.low %v1227, %v1234
    %v1236 = vcombine.low %v1176, %v1177
    %v1237 = vcombine.low %v1178, %v1179
    %v1239 = vunpack.c.l.s4 1983009808
    %v1240 = vunpack.c.0.s8 %v1239
    %v1241 = vlaneseq
    %v1242 = vshrl.u32 %v1241, 7
    %v1243 = vsub.s32 %v1240, %v1242
    %v1244 = vrot.slane %v1236, %v1243
    %v1246 = vunpack.c.l.s4 1983009808
    %v1247 = vunpack.c.0.s8 %v1246
    %v1248 = vlaneseq
    %v1249 = vshrl.u32 %v1248, 7
    %v1250 = vsub.s32 %v1247, %v1249
    %v1251 = vrot.slane %v1237, %v1250
    %v1252 = vcombine.low %v1244, %v1251
    %v1253 = vcombine.low %v1180, %v1181
    %v1254 = vcombine.low %v1182, %v1183
    %v1256 = vunpack.c.l.s4 1983009808
    %v1257 = vunpack.c.0.s8 %v1256
    %v1258 = vlaneseq
    %v1259 = vshrl.u32 %v1258, 7
    %v1260 = vsub.s32 %v1257, %v1259
    %v1261 = vrot.slane %v1253, %v1260
    %v1263 = vunpack.c.l.s4 1983009808
    %v1264 = vunpack.c.0.s8 %v1263
    %v1265 = vlaneseq
    %v1266 = vshrl.u32 %v1265, 7
    %v1267 = vsub.s32 %v1264, %v1266
    %v1268 = vrot.slane %v1254, %v1267
    %v1269 = vcombine.low %v1261, %v1268
    %v1271 = vunpack.c.l.s4 1983009808
    %v1272 = vunpack.c.0.s8 %v1271
    %v1273 = vlaneseq
    %v1274 = vshrl.u32 %v1273, 7
    %v1275 = vsub.s32 %v1272, %v1274
    %v1276 = vrot.slane %v1184, %v1275
    %v1282 = vadd.f32 %v1163, %v1218
    %v1283 = vadd.f32 %v1164, %v1235
    %v1284 = vadd.f32 %v1165, %v1252
    %v1285 = vadd.f32 %v1166, %v1269
    %v1286 = vadd.f32 %v1167, %v1276
    %1287 = vst [vmem:[#allocation8] sm:$0xff] %v1282
    %1288 = vst [vmem:[#allocation8 + $0x8] sm:$0xff] %v1283
    %1289 = vst [vmem:[#allocation8 + $0x10] sm:$0xff] %v1284
    %1290 = vst [vmem:[#allocation8 + $0x18] sm:$0xff] %v1285
    %1291 = vst [vmem:[#allocation8 + $0x20] sm:$0x3] %v1286
    // Predicated region
    $region30: #{tpu_custom_call.1} parent=1 // pred_check
      _
    $region31: #{tpu_custom_call.1} parent=1 // pred_check_branch
      %1293 = sbr.rel (0) target = $region33
    $region32: #{tpu_custom_call.1} parent=1 // pred_region
      %s1295 = ssub.s32 544, 544
      %1296 = vsyncadd [#allocation4], %s1295
      %s1298 = sshll.u32 [#allocation7], 4
      %s1299 = int_to_ptr.vmem [resolvable:$true] %s1298
      %1301 = dma.vmem_to_hbm [thread:$0]  %s1299, 544, %s5, [#allocation4]
    $region33: #{tpu_custom_call.1} parent=1 // pred_fallthru
      _
    // Predicated region
    $region34: #{tpu_custom_call.1} parent=1 // pred_check
      _
    $region35: #{tpu_custom_call.1} parent=1 // pred_check_branch
      %1303 = sbr.rel (0) target = $region37
    $region36: #{tpu_custom_call.1} parent=1 // pred_region
      %s1305 = ssub.s32 544, 544
      %1306 = vsyncadd [#allocation9], %s1305
      %s1308 = sshll.u32 [#allocation8], 4
      %s1309 = int_to_ptr.vmem [resolvable:$true] %s1308
      %1311 = dma.vmem_to_hbm [thread:$0]  %s1309, 544, %s6, [#allocation9]
    $region37: #{tpu_custom_call.1} parent=1 // pred_fallthru
      _
    // Predicated region
    $region38: #{tpu_custom_call.1} parent=1 // pred_check
      _
    $region39: #{tpu_custom_call.1} parent=1 // pred_check_branch
      %1313 = sbr.rel (0) target = $region41
    $region40: #{tpu_custom_call.1} parent=1 // pred_region
      %1314 = dma.done [#allocation4], 544
    $region41: #{tpu_custom_call.1} parent=1 // pred_fallthru
      _
    // Predicated region
    $region42: #{tpu_custom_call.1} parent=1 // pred_check
      _
    $region43: #{tpu_custom_call.1} parent=1 // pred_check_branch
      %1316 = sbr.rel (0) target = $region45
    $region44: #{tpu_custom_call.1} parent=1 // pred_region
      %1317 = dma.done [#allocation9], 544
    $region45: #{tpu_custom_call.1} parent=1 // pred_fallthru
      _
    %1318 = vsyncpa [#allocation3], 1
    %1319 = vsyncpa [#allocation6], 1
    %1320 = vsyncpa [#allocation4], 1
    %1321 = vsyncpa [#allocation9], 1

</llo_original>
